<compile_context>
chip_gen: v7x
topology: tpu7x:2x2x1
jax: 0.10.0
libtpu: 0.0.40
codegen_flags: <defaults>
</compile_context>

<pallas_src>
import functools

import jax
import jax.numpy as jnp
from jax.experimental import pallas as pl
from jax.experimental.pallas import tpu as pltpu


HIDDEN_SIZES = [460, 200, 20]
OUTPUT_SIZE = 3

LANE = 128
# Padded (MXU / lane aligned) layer widths: 460->512, 200->256, 20->128, 3->128.
H1_PAD, H2_PAD, H3_PAD = 512, 256, 128
OUT_PAD = 128


def _round_up(n, m):
    return ((n + m - 1) // m) * m


def _pick_tile_b(batch, requested):
    """Choose the effective batch tile.

    * tiny batches: one tile, sublane (8) aligned.
    * otherwise: at least 2 grid steps (v7x megacore needs >=2 to use both
      TensorCores) and tile ~ round_up(cdiv(B, n_tiles), 256) so the tail
      tile's zero-padding waste stays small.
    """
    requested = max(256, _round_up(requested, 256))
    if batch <= 256:
        return _round_up(max(batch, 1), 8)
    n_tiles = max(2, pl.cdiv(batch, requested))
    return min(requested, _round_up(pl.cdiv(batch, n_tiles), 256))


def _qnet_kernel(x_ref,
                 w1_ref, b1_ref,
                 w2_ref, b2_ref,
                 w3_ref, b3_ref,
                 w4_ref, b4_ref,
                 out_ref):
    # Cast the unpadded f32 input tile to bf16 in-kernel (no wrapper-side
    # pad/cast HBM pass); K is padded internally in vregs by Mosaic.
    x = x_ref[...].astype(jnp.bfloat16)

    # Layer 1: bf16 MXU matmul, f32 accumulate; bias + ReLU in bf16 (2 elems
    # per 32-bit VPU lane on v6e/v7x, half-size intermediates).
    h = jnp.dot(x, w1_ref[...], preferred_element_type=jnp.float32)
    h = jnp.maximum(h.astype(jnp.bfloat16) + b1_ref[...], 0)

    # Layer 2
    h = jnp.dot(h, w2_ref[...], preferred_element_type=jnp.float32)
    h = jnp.maximum(h.astype(jnp.bfloat16) + b2_ref[...], 0)

    # Layer 3
    h = jnp.dot(h, w3_ref[...], preferred_element_type=jnp.float32)
    h = jnp.maximum(h.astype(jnp.bfloat16) + b3_ref[...], 0)

    # Output layer (no activation); padded output columns are exactly zero.
    y = jnp.dot(h, w4_ref[...], preferred_element_type=jnp.float32)
    out_ref[...] = (y.astype(jnp.bfloat16) + b4_ref[...]).astype(out_ref.dtype)


def init_params(key, input_size, hidden_sizes, output_size):
    """Deterministic PyTorch-style (uniform +-1/sqrt(fan_in)) init, f32."""
    sizes = [input_size] + list(hidden_sizes) + [output_size]
    params = []
    for i in range(len(sizes) - 1):
        fan_in, fan_out = sizes[i], sizes[i + 1]
        key, kw, kb = jax.random.split(key, 3)
        bound = 1.0 / (fan_in ** 0.5)
        w = jax.random.uniform(kw, (fan_in, fan_out), jnp.float32,
                               minval=-bound, maxval=bound)
        b = jax.random.uniform(kb, (1, fan_out), jnp.float32,
                               minval=-bound, maxval=bound)
        params.append((w, b))
    return params


def prepare_params(params):
    """One-time: zero-pad to aligned shapes, cast weights AND biases to bf16.

    Layer 1 keeps K = input_size (x is fed unpadded); every layer's output
    dim is padded to a lane-aligned width, and each following layer's K is
    padded to match. Zero padding is exact through the ReLU layers.
    """
    out_pads = [H1_PAD, H2_PAD, H3_PAD, OUT_PAD]
    in_pads = [None, H1_PAD, H2_PAD, H3_PAD]
    prepared = []
    for idx, ((w, b), n_pad) in enumerate(zip(params, out_pads)):
        k, n = w.shape
        k_pad = k if idx == 0 else in_pads[idx]
        w_p = jnp.zeros((k_pad, n_pad), jnp.bfloat16)
        w_p = w_p.at[:k, :n].set(w.astype(jnp.bfloat16))
        b_p = jnp.zeros((1, n_pad), jnp.bfloat16)
        b_p = b_p.at[:, :n].set(b.astype(jnp.bfloat16))
        prepared.append((w_p, b_p))
    return prepared


@functools.partial(jax.jit, static_argnames=("tile_b",))
def advanced_qnet_forward(x, prepared_params, tile_b=1024):
    """Fused MLP forward.

    x: [B, input_size] float32 (unpadded)
    prepared_params: output of prepare_params (padded bf16 W and b)
    returns: [B, OUTPUT_SIZE] float32
    """
    batch, in_features = x.shape
    out_pad = prepared_params[-1][0].shape[1]

    tile_b_eff = _pick_tile_b(batch, tile_b)
    grid = (pl.cdiv(batch, tile_b_eff),)

    # x walks the batch axis; weights/biases use a constant block index so
    # they stay VMEM-resident across the whole grid (no re-DMA per tile).
    in_specs = [pl.BlockSpec((tile_b_eff, in_features), lambda i: (i, 0))]
    flat_params = []
    for w, b in prepared_params:
        flat_params.extend([w, b])
        in_specs.append(pl.BlockSpec(w.shape, lambda i: (0, 0)))
        in_specs.append(pl.BlockSpec(b.shape, lambda i: (0, 0)))

    out = pl.pallas_call(
        _qnet_kernel,
        out_shape=jax.ShapeDtypeStruct((batch, out_pad), jnp.bfloat16),
        grid=grid,
        in_specs=in_specs,
        out_specs=pl.BlockSpec((tile_b_eff, out_pad), lambda i: (i, 0)),
        compiler_params=pltpu.CompilerParams(
            dimension_semantics=("parallel",),
            # Only needed when the tile is pushed past ~1024 (v5e 16 MiB
            # scoped default); 32 MiB is the v6e/v7x default, safe everywhere.
            vmem_limit_bytes=(32 * 1024 * 1024) if tile_b_eff > 1024 else None,
        ),
    )(x, *flat_params)

    # Only 3 of the 128 lane-padded output columns are real Q-values.
    return out[:, :OUTPUT_SIZE].astype(jnp.float32)


def reference_forward(x, prepared_params):
    """Pure-JAX reference mirroring the kernel numerics exactly
    (bf16 inputs/post-ops, f32 matmul accumulation, bf16 output)."""
    h = x.astype(jnp.bfloat16)
    n_layers = len(prepared_params)
    for i, (w, b) in enumerate(prepared_params):
        acc = jnp.dot(h, w, preferred_element_type=jnp.float32)
        h = acc.astype(jnp.bfloat16) + b
        if i < n_layers - 1:
            h = jnp.maximum(h, 0)
    return h[:, :OUTPUT_SIZE].astype(jnp.float32)


if __name__ == "__main__":
    key = jax.random.PRNGKey(0)
    k_x, k_x2, k_p = jax.random.split(key, 3)

    batch = 2
    input_size = 32  # module accepts arbitrary input_size; small synthetic pick

    params = init_params(k_p, input_size, HIDDEN_SIZES, OUTPUT_SIZE)
    prepared = prepare_params(params)

    # Small-batch case (single grid step, partial block).
    x = jax.random.normal(k_x, (batch, input_size), jnp.float32)
    out = jax.block_until_ready(advanced_qnet_forward(x, prepared))
    ref = reference_forward(x, prepared)
    assert out.shape == (batch, OUTPUT_SIZE)
    assert jnp.allclose(out, ref, atol=1e-2, rtol=1e-2)

    # Larger, non-multiple batch: exercises the multi-tile grid (>=2 steps
    # for v7x megacore) and the masked tail tile.
    big_batch = 520
    x2 = jax.random.normal(k_x2, (big_batch, input_size), jnp.float32)
    out2 = jax.block_until_ready(advanced_qnet_forward(x2, prepared, tile_b=1024))
    ref2 = reference_forward(x2, prepared)
    assert out2.shape == (big_batch, OUTPUT_SIZE)
    assert jnp.allclose(out2, ref2, atol=1e-2, rtol=1e-2)

    print("KERNEL_OK")
</pallas_src>

<mosaic_0001>
module attributes {stable_mosaic.version = 11 : i64} {
  func.func @_qnet_kernel(%arg0: i32, %arg1: memref<8x32xf32, #tpu.memory_space<vmem>>, %arg2: memref<32x512xbf16, #tpu.memory_space<vmem>>, %arg3: memref<1x512xbf16, #tpu.memory_space<vmem>>, %arg4: memref<512x256xbf16, #tpu.memory_space<vmem>>, %arg5: memref<1x256xbf16, #tpu.memory_space<vmem>>, %arg6: memref<256x128xbf16, #tpu.memory_space<vmem>>, %arg7: memref<1x128xbf16, #tpu.memory_space<vmem>>, %arg8: memref<128x128xbf16, #tpu.memory_space<vmem>>, %arg9: memref<1x128xbf16, #tpu.memory_space<vmem>>, %arg10: memref<8x128xbf16, #tpu.memory_space<vmem>>) attributes {dimension_semantics = [#tpu.dimension_semantics<parallel>], iteration_bounds = array<i64: 1>, scalar_prefetch = 0 : i64, scratch_operands = 0 : i64, tpu.core_type = #tpu.core_type<tc>, window_params = [{transform_indices = @transform_0, window_bounds = array<i64: 8, 32>}, {pipeline_mode = #tpu.pipeline_mode<synchronous>, transform_indices = @transform_1, window_bounds = array<i64: 32, 512>}, {pipeline_mode = #tpu.pipeline_mode<synchronous>, transform_indices = @transform_2, window_bounds = array<i64: 1, 512>}, {pipeline_mode = #tpu.pipeline_mode<synchronous>, transform_indices = @transform_3, window_bounds = array<i64: 512, 256>}, {pipeline_mode = #tpu.pipeline_mode<synchronous>, transform_indices = @transform_4, window_bounds = array<i64: 1, 256>}, {pipeline_mode = #tpu.pipeline_mode<synchronous>, transform_indices = @transform_5, window_bounds = array<i64: 256, 128>}, {pipeline_mode = #tpu.pipeline_mode<synchronous>, transform_indices = @transform_6, window_bounds = array<i64: 1, 128>}, {pipeline_mode = #tpu.pipeline_mode<synchronous>, transform_indices = @transform_7, window_bounds = array<i64: 128, 128>}, {pipeline_mode = #tpu.pipeline_mode<synchronous>, transform_indices = @transform_8, window_bounds = array<i64: 1, 128>}, {transform_indices = @transform_9, window_bounds = array<i64: 8, 128>}]} {
    %c0 = arith.constant 0 : index
    %c0_0 = arith.constant 0 : index
    %0 = vector.load %arg1[%c0, %c0_0] : memref<8x32xf32, #tpu.memory_space<vmem>>, vector<8x32xf32>
    %1 = arith.truncf %0 : vector<8x32xf32> to vector<8x32xbf16>
    %c0_1 = arith.constant 0 : index
    %c0_2 = arith.constant 0 : index
    %2 = vector.load %arg2[%c0_1, %c0_2] : memref<32x512xbf16, #tpu.memory_space<vmem>>, vector<32x512xbf16>
    %cst = arith.constant dense<0.000000e+00> : vector<8x512xf32>
    %3 = tpu.matmul %1, %2, %cst {dimension_numbers = #tpu.dot_dimension_numbers<[1], [0], [0], [1], [0, 0, 1, 1], [], []>} : vector<8x32xbf16>, vector<32x512xbf16>, vector<8x512xf32> -> vector<8x512xf32>
    %4 = arith.truncf %3 : vector<8x512xf32> to vector<8x512xbf16>
    %c0_3 = arith.constant 0 : index
    %c0_4 = arith.constant 0 : index
    %5 = vector.load %arg3[%c0_3, %c0_4] : memref<1x512xbf16, #tpu.memory_space<vmem>>, vector<1x512xbf16>
    %6 = vector.broadcast %5 : vector<1x512xbf16> to vector<8x512xbf16>
    %7 = arith.addf %4, %6 : vector<8x512xbf16>
    %cst_5 = arith.constant 0.000000e+00 : bf16
    %8 = vector.broadcast %cst_5 : bf16 to vector<8x512xbf16>
    %9 = arith.maximumf %7, %8 : vector<8x512xbf16>
    %c0_6 = arith.constant 0 : index
    %c0_7 = arith.constant 0 : index
    %10 = vector.load %arg4[%c0_6, %c0_7] : memref<512x256xbf16, #tpu.memory_space<vmem>>, vector<512x256xbf16>
    %cst_8 = arith.constant dense<0.000000e+00> : vector<8x256xf32>
    %11 = tpu.matmul %9, %10, %cst_8 {dimension_numbers = #tpu.dot_dimension_numbers<[1], [0], [0], [1], [0, 0, 1, 1], [], []>} : vector<8x512xbf16>, vector<512x256xbf16>, vector<8x256xf32> -> vector<8x256xf32>
    %12 = arith.truncf %11 : vector<8x256xf32> to vector<8x256xbf16>
    %c0_9 = arith.constant 0 : index
    %c0_10 = arith.constant 0 : index
    %13 = vector.load %arg5[%c0_9, %c0_10] : memref<1x256xbf16, #tpu.memory_space<vmem>>, vector<1x256xbf16>
    %14 = vector.broadcast %13 : vector<1x256xbf16> to vector<8x256xbf16>
    %15 = arith.addf %12, %14 : vector<8x256xbf16>
    %cst_11 = arith.constant 0.000000e+00 : bf16
    %16 = vector.broadcast %cst_11 : bf16 to vector<8x256xbf16>
    %17 = arith.maximumf %15, %16 : vector<8x256xbf16>
    %c0_12 = arith.constant 0 : index
    %c0_13 = arith.constant 0 : index
    %18 = vector.load %arg6[%c0_12, %c0_13] : memref<256x128xbf16, #tpu.memory_space<vmem>>, vector<256x128xbf16>
    %cst_14 = arith.constant dense<0.000000e+00> : vector<8x128xf32>
    %19 = tpu.matmul %17, %18, %cst_14 {dimension_numbers = #tpu.dot_dimension_numbers<[1], [0], [0], [1], [0, 0, 1, 1], [], []>} : vector<8x256xbf16>, vector<256x128xbf16>, vector<8x128xf32> -> vector<8x128xf32>
    %20 = arith.truncf %19 : vector<8x128xf32> to vector<8x128xbf16>
    %c0_15 = arith.constant 0 : index
    %c0_16 = arith.constant 0 : index
    %21 = vector.load %arg7[%c0_15, %c0_16] : memref<1x128xbf16, #tpu.memory_space<vmem>>, vector<1x128xbf16>
    %22 = vector.broadcast %21 : vector<1x128xbf16> to vector<8x128xbf16>
    %23 = arith.addf %20, %22 : vector<8x128xbf16>
    %cst_17 = arith.constant 0.000000e+00 : bf16
    %24 = vector.broadcast %cst_17 : bf16 to vector<8x128xbf16>
    %25 = arith.maximumf %23, %24 : vector<8x128xbf16>
    %c0_18 = arith.constant 0 : index
    %c0_19 = arith.constant 0 : index
    %26 = vector.load %arg8[%c0_18, %c0_19] : memref<128x128xbf16, #tpu.memory_space<vmem>>, vector<128x128xbf16>
    %cst_20 = arith.constant dense<0.000000e+00> : vector<8x128xf32>
    %27 = tpu.matmul %25, %26, %cst_20 {dimension_numbers = #tpu.dot_dimension_numbers<[1], [0], [0], [1], [0, 0, 1, 1], [], []>} : vector<8x128xbf16>, vector<128x128xbf16>, vector<8x128xf32> -> vector<8x128xf32>
    %28 = arith.truncf %27 : vector<8x128xf32> to vector<8x128xbf16>
    %c0_21 = arith.constant 0 : index
    %c0_22 = arith.constant 0 : index
    %29 = vector.load %arg9[%c0_21, %c0_22] : memref<1x128xbf16, #tpu.memory_space<vmem>>, vector<1x128xbf16>
    %30 = vector.broadcast %29 : vector<1x128xbf16> to vector<8x128xbf16>
    %31 = arith.addf %28, %30 : vector<8x128xbf16>
    %c0_23 = arith.constant 0 : index
    %c0_24 = arith.constant 0 : index
    %32 = vector.load %arg10[%c0_23, %c0_24] : memref<8x128xbf16, #tpu.memory_space<vmem>>, vector<8x128xbf16>
    tpu.vector_store %arg10[%c0_23, %c0_24], %31 {strides = array<i32>} : memref<8x128xbf16, #tpu.memory_space<vmem>>, vector<8x128xbf16>,
    return
  }
  func.func @transform_0(%arg0: i32) -> (i32, i32) {
    %c0_i32 = arith.constant 0 : i32
    %c0_i32_0 = arith.constant 0 : i32
    return %arg0, %c0_i32 : i32, i32
  }
  func.func @transform_1(%arg0: i32) -> (i32, i32) {
    %c0_i32 = arith.constant 0 : i32
    %c0_i32_0 = arith.constant 0 : i32
    %c0_i32_1 = arith.constant 0 : i32
    return %c0_i32, %c0_i32_0 : i32, i32
  }
  func.func @transform_2(%arg0: i32) -> (i32, i32) {
    %c0_i32 = arith.constant 0 : i32
    %c0_i32_0 = arith.constant 0 : i32
    %c0_i32_1 = arith.constant 0 : i32
    return %c0_i32, %c0_i32_0 : i32, i32
  }
  func.func @transform_3(%arg0: i32) -> (i32, i32) {
    %c0_i32 = arith.constant 0 : i32
    %c0_i32_0 = arith.constant 0 : i32
    %c0_i32_1 = arith.constant 0 : i32
    return %c0_i32, %c0_i32_0 : i32, i32
  }
  func.func @transform_4(%arg0: i32) -> (i32, i32) {
    %c0_i32 = arith.constant 0 : i32
    %c0_i32_0 = arith.constant 0 : i32
    %c0_i32_1 = arith.constant 0 : i32
    return %c0_i32, %c0_i32_0 : i32, i32
  }
  func.func @transform_5(%arg0: i32) -> (i32, i32) {
    %c0_i32 = arith.constant 0 : i32
    %c0_i32_0 = arith.constant 0 : i32
    %c0_i32_1 = arith.constant 0 : i32
    return %c0_i32, %c0_i32_0 : i32, i32
  }
  func.func @transform_6(%arg0: i32) -> (i32, i32) {
    %c0_i32 = arith.constant 0 : i32
    %c0_i32_0 = arith.constant 0 : i32
    %c0_i32_1 = arith.constant 0 : i32
    return %c0_i32, %c0_i32_0 : i32, i32
  }
  func.func @transform_7(%arg0: i32) -> (i32, i32) {
    %c0_i32 = arith.constant 0 : i32
    %c0_i32_0 = arith.constant 0 : i32
    %c0_i32_1 = arith.constant 0 : i32
    return %c0_i32, %c0_i32_0 : i32, i32
  }
  func.func @transform_8(%arg0: i32) -> (i32, i32) {
    %c0_i32 = arith.constant 0 : i32
    %c0_i32_0 = arith.constant 0 : i32
    %c0_i32_1 = arith.constant 0 : i32
    return %c0_i32, %c0_i32_0 : i32, i32
  }
  func.func @transform_9(%arg0: i32) -> (i32, i32) {
    %c0_i32 = arith.constant 0 : i32
    %c0_i32_0 = arith.constant 0 : i32
    return %arg0, %c0_i32 : i32, i32
  }
}

</mosaic_0001>

<llo_original>
// kernel: advanced_qnet_forward.1
$region0: #{advanced_qnet_forward.1}
  #allocation0 [shape = 'u32[]', space=smem, size = 0x4, offset = 0x4, fixed_abs, tag = 'smem constant byte address 0x4 - core index']
  #allocation1 [shape = 'u32[144,128]{1,0:T(1,128)}', space=vmem, size = 0x12000, scoped, tag = 'internal scratch']
  %s0 = inlined_call_operand.hbm [shape: f32[2,32], index: 0, kind: input, shape index: {}]
  %s1 = inlined_call_operand.hbm [shape: bf16[32,512], index: 1, kind: input, shape index: {}]
  %s2 = inlined_call_operand.vmem [shape: bf16[1,512], index: 2, kind: input, shape index: {}]
  %s3 = inlined_call_operand.hbm [shape: bf16[512,256], index: 3, kind: input, shape index: {}]
  %s4 = inlined_call_operand.vmem [shape: bf16[1,256], index: 4, kind: input, shape index: {}]
  %s5 = inlined_call_operand.hbm [shape: bf16[256,128], index: 5, kind: input, shape index: {}]
  %s6 = inlined_call_operand.vmem [shape: bf16[1,128], index: 6, kind: input, shape index: {}]
  %s7 = inlined_call_operand.hbm [shape: bf16[128,128], index: 7, kind: input, shape index: {}]
  %s8 = inlined_call_operand.vmem [shape: bf16[1,128], index: 8, kind: input, shape index: {}]
  %s9 = inlined_call_operand.vmem [shape: bf16[2,128], index: 9, kind: output, shape index: {}]
  %s10 = sld [smem:[#allocation0]]
  $region96: #{advanced_qnet_forward.1} parent=0
    _
  %s12 = ssub.s32 1, %s10
  %s13 = scalar_select 0, %s12, %s10
  $region1: #{advanced_qnet_forward.1} parent=0
    #allocation2 [shape = 'u8[4096]{0}', space=vmem, size = 0x1000, scoped, tag = 'input window, operand 0, single buffered']
    #allocation3 [shape = 's32[1]{0}', space=sflag, size = 0x4, scoped, tag = 'scoped memory for advanced_qnet_forward.1']
    #allocation4 [shape = 'u8[32768]{0}', space=vmem, size = 0x8000, scoped, tag = 'input window, operand 1, single buffered']
    #allocation5 [shape = 's32[1]{0}', space=sflag, size = 0x4, scoped, tag = 'scoped memory for advanced_qnet_forward.1']
    #allocation6 [shape = 'u8[262144]{0}', space=vmem, size = 0x40000, scoped, tag = 'input window, operand 3, single buffered']
    #allocation7 [shape = 'u8[65536]{0}', space=vmem, size = 0x10000, scoped, tag = 'input window, operand 5, single buffered']
    #allocation8 [shape = 's32[1]{0}', space=sflag, size = 0x4, scoped, tag = 'scoped memory for advanced_qnet_forward.1']
    #allocation9 [shape = 'u8[32768]{0}', space=vmem, size = 0x8000, scoped, tag = 'input window, operand 7, single buffered']
    #allocation10 [shape = 'u8[2048]{0}', space=vmem, size = 0x800, scoped, tag = 'output window, operand 0, single buffered']
    %14 = vsyncpa [#allocation3], 0
    %15 = vsyncpa [#allocation5], 0
    %16 = vsyncpa [#allocation8], 0
    // Predicated region
    $region2: #{advanced_qnet_forward.1} parent=1 // pred_check
      _
    $region3: #{advanced_qnet_forward.1} parent=1 // pred_check_branch
      %18 = sbr.rel (0) target = $region5
    $region4: #{advanced_qnet_forward.1} parent=1 // pred_region
      %s20 = ssub.s32 128, 32
      %21 = vsyncadd [#allocation3], %s20
      %s22 = sshll.u32 [#allocation2], 4
      %s23 = int_to_ptr.vmem [resolvable:$true] %s22
      %28 = dma.hbm_to_vmem [thread:$0]  %s0, 32, %s23, [#allocation3], 32, 32, 2
    $region5: #{advanced_qnet_forward.1} parent=1 // pred_fallthru
      _
    // Predicated region
    $region6: #{advanced_qnet_forward.1} parent=1 // pred_check
      _
    $region7: #{advanced_qnet_forward.1} parent=1 // pred_check_branch
      %30 = sbr.rel (0) target = $region9
    $region8: #{advanced_qnet_forward.1} parent=1 // pred_region
      %s32 = ssub.s32 1024, 1024
      %33 = vsyncadd [#allocation5], %s32
      %s34 = sshll.u32 [#allocation4], 4
      %s35 = int_to_ptr.vmem [resolvable:$true] %s34
      %40 = dma.hbm_to_vmem [thread:$0]  %s1, 1024, %s35, [#allocation5], 256, 256, 16
    $region9: #{advanced_qnet_forward.1} parent=1 // pred_fallthru
      _
    // Predicated region
    $region10: #{advanced_qnet_forward.1} parent=1 // pred_check
      _
    $region11: #{advanced_qnet_forward.1} parent=1 // pred_check_branch
      %42 = sbr.rel (0) target = $region13
    $region12: #{advanced_qnet_forward.1} parent=1 // pred_region
      _
    $region13: #{advanced_qnet_forward.1} parent=1 // pred_fallthru
      _
    // Predicated region
    $region14: #{advanced_qnet_forward.1} parent=1 // pred_check
      _
    $region15: #{advanced_qnet_forward.1} parent=1 // pred_check_branch
      %44 = sbr.rel (0) target = $region17
    $region16: #{advanced_qnet_forward.1} parent=1 // pred_region
      %s46 = ssub.s32 8192, 8192
      %47 = vsyncadd [#allocation5], %s46
      %s48 = sshll.u32 [#allocation6], 4
      %s49 = int_to_ptr.vmem [resolvable:$true] %s48
      %54 = dma.hbm_to_vmem [thread:$0]  %s3, 8192, %s49, [#allocation5], 128, 128, 8
    $region17: #{advanced_qnet_forward.1} parent=1 // pred_fallthru
      _
    // Predicated region
    $region18: #{advanced_qnet_forward.1} parent=1 // pred_check
      _
    $region19: #{advanced_qnet_forward.1} parent=1 // pred_check_branch
      %56 = sbr.rel (0) target = $region21
    $region20: #{advanced_qnet_forward.1} parent=1 // pred_region
      _
    $region21: #{advanced_qnet_forward.1} parent=1 // pred_fallthru
      _
    // Predicated region
    $region22: #{advanced_qnet_forward.1} parent=1 // pred_check
      _
    $region23: #{advanced_qnet_forward.1} parent=1 // pred_check_branch
      %58 = sbr.rel (0) target = $region25
    $region24: #{advanced_qnet_forward.1} parent=1 // pred_region
      %s60 = ssub.s32 2048, 2048
      %61 = vsyncadd [#allocation8], %s60
      %s62 = sshll.u32 [#allocation7], 4
      %s63 = int_to_ptr.vmem [resolvable:$true] %s62
      %68 = dma.hbm_to_vmem [thread:$0]  %s5, 2048, %s63, [#allocation8], 64, 64, 4
    $region25: #{advanced_qnet_forward.1} parent=1 // pred_fallthru
      _
    // Predicated region
    $region26: #{advanced_qnet_forward.1} parent=1 // pred_check
      _
    $region27: #{advanced_qnet_forward.1} parent=1 // pred_check_branch
      %70 = sbr.rel (0) target = $region29
    $region28: #{advanced_qnet_forward.1} parent=1 // pred_region
      _
    $region29: #{advanced_qnet_forward.1} parent=1 // pred_fallthru
      _
    // Predicated region
    $region30: #{advanced_qnet_forward.1} parent=1 // pred_check
      _
    $region31: #{advanced_qnet_forward.1} parent=1 // pred_check_branch
      %72 = sbr.rel (0) target = $region33
    $region32: #{advanced_qnet_forward.1} parent=1 // pred_region
      %s74 = ssub.s32 1024, 1024
      %75 = vsyncadd [#allocation8], %s74
      %s76 = sshll.u32 [#allocation9], 4
      %s77 = int_to_ptr.vmem [resolvable:$true] %s76
      %82 = dma.hbm_to_vmem [thread:$0]  %s7, 1024, %s77, [#allocation8], 64, 64, 4
    $region33: #{advanced_qnet_forward.1} parent=1 // pred_fallthru
      _
    // Predicated region
    $region34: #{advanced_qnet_forward.1} parent=1 // pred_check
      _
    $region35: #{advanced_qnet_forward.1} parent=1 // pred_check_branch
      %84 = sbr.rel (0) target = $region37
    $region36: #{advanced_qnet_forward.1} parent=1 // pred_region
      _
    $region37: #{advanced_qnet_forward.1} parent=1 // pred_fallthru
      _
    // Predicated region
    $region38: #{advanced_qnet_forward.1} parent=1 // pred_check
      _
    $region39: #{advanced_qnet_forward.1} parent=1 // pred_check_branch
      %86 = sbr.rel (0) target = $region41
    $region40: #{advanced_qnet_forward.1} parent=1 // pred_region
      %87 = dma.done [#allocation3], 128
    $region41: #{advanced_qnet_forward.1} parent=1 // pred_fallthru
      _
    // Predicated region
    $region42: #{advanced_qnet_forward.1} parent=1 // pred_check
      _
    $region43: #{advanced_qnet_forward.1} parent=1 // pred_check_branch
      %89 = sbr.rel (0) target = $region45
    $region44: #{advanced_qnet_forward.1} parent=1 // pred_region
      %90 = dma.done [#allocation5], 1024
    $region45: #{advanced_qnet_forward.1} parent=1 // pred_fallthru
      _
    // Predicated region
    $region46: #{advanced_qnet_forward.1} parent=1 // pred_check
      _
    $region47: #{advanced_qnet_forward.1} parent=1 // pred_check_branch
      %92 = sbr.rel (0) target = $region49
    $region48: #{advanced_qnet_forward.1} parent=1 // pred_region
      %93 = dma.done [#allocation5], 8192
    $region49: #{advanced_qnet_forward.1} parent=1 // pred_fallthru
      _
    // Predicated region
    $region50: #{advanced_qnet_forward.1} parent=1 // pred_check
      _
    $region51: #{advanced_qnet_forward.1} parent=1 // pred_check_branch
      %95 = sbr.rel (0) target = $region53
    $region52: #{advanced_qnet_forward.1} parent=1 // pred_region
      %96 = dma.done [#allocation8], 2048
    $region53: #{advanced_qnet_forward.1} parent=1 // pred_fallthru
      _
    // Predicated region
    $region54: #{advanced_qnet_forward.1} parent=1 // pred_check
      _
    $region55: #{advanced_qnet_forward.1} parent=1 // pred_check_branch
      %98 = sbr.rel (0) target = $region57
    $region56: #{advanced_qnet_forward.1} parent=1 // pred_region
      %99 = dma.done [#allocation8], 1024
    $region57: #{advanced_qnet_forward.1} parent=1 // pred_fallthru
      _
    %v101 = vld [vmem:[#allocation2] sm:$0xff]
    %v102 = vpack.c.bf16 %v101, %v101
    %v103 = vld [vmem:[#allocation4] sm:$0xff]
    %v104 = vld [vmem:[#allocation4 + $0x8] sm:$0xff]
    %v105 = vld [vmem:[#allocation4 + $0x10] sm:$0xff]
    %v106 = vld [vmem:[#allocation4 + $0x18] sm:$0xff]
    %v107 = vld [vmem:[#allocation4 + $0x20] sm:$0xff]
    %v108 = vld [vmem:[#allocation4 + $0x28] sm:$0xff]
    %v109 = vld [vmem:[#allocation4 + $0x30] sm:$0xff]
    %v110 = vld [vmem:[#allocation4 + $0x38] sm:$0xff]
    %v119 = vunpack.c.l.b16 %v103
    %v120 = vunpack.c.h.b16 %v103
    %v121 = vunpack.c.l.b16 %v104
    %v122 = vunpack.c.h.b16 %v104
    %v123 = vunpack.c.l.b16 %v105
    %v124 = vunpack.c.h.b16 %v105
    %v125 = vunpack.c.l.b16 %v106
    %v126 = vunpack.c.h.b16 %v106
    %v127 = vunpack.c.l.b16 %v107
    %v128 = vunpack.c.h.b16 %v107
    %v129 = vunpack.c.l.b16 %v108
    %v130 = vunpack.c.h.b16 %v108
    %v131 = vunpack.c.l.b16 %v109
    %v132 = vunpack.c.h.b16 %v109
    %v133 = vunpack.c.l.b16 %v110
    %v134 = vunpack.c.h.b16 %v110
    %v135 = vpack.c.b16 %v123, %v119
    %v136 = vpack.c.b16 %v124, %v120
    %v137 = vpack.c.b16 %v125, %v121
    %v138 = vpack.c.b16 %v126, %v122
    %v139 = vpack.c.b16 %v131, %v127
    %v140 = vpack.c.b16 %v132, %v128
    %v141 = vpack.c.b16 %v133, %v129
    %v142 = vpack.c.b16 %v134, %v130
    %vm151 = vcmask 261120
    %v153 = vsel %vm151, %v102, 0
    %155 = vmatprep.subr.bf16.mxu0 %v136
    %156 = vmatpush1.bf16.msra.mxu0 %v135
    %157 = vmatprep.subr.bf16.mxu0 %v140
    %158 = vmatpush1.bf16.msra.mxu0 %v139
    %159 = vmatprep.subr.bf16.mxu0 0
    %160 = vmatpush1.bf16.msra.mxu0 0
    %161 = vmatprep.subr.bf16.mxu0 0
    %162 = vmatpush1.bf16.msra.mxu0 0
    %163 = vmatprep.subr.bf16.mxu0 0
    %164 = vmatpush1.bf16.msra.mxu0 0
    %165 = vmatprep.subr.bf16.mxu0 0
    %166 = vmatpush1.bf16.msra.mxu0 0
    %167 = vmatprep.subr.bf16.mxu0 0
    %168 = vmatpush1.bf16.msra.mxu0 0
    %169 = vmatprep.subr.bf16.mxu0 0
    %170 = vmatpush1.bf16.msra.mxu0 0
    %171 = vmatprep.subr.bf16.mxu0 0
    %172 = vmatpush1.bf16.msra.mxu0 0
    %173 = vmatprep.subr.bf16.mxu0 0
    %174 = vmatpush1.bf16.msra.mxu0 0
    %175 = vmatprep.subr.bf16.mxu0 0
    %176 = vmatpush1.bf16.msra.mxu0 0
    %177 = vmatprep.subr.bf16.mxu0 0
    %178 = vmatpush1.bf16.msra.mxu0 0
    %179 = vmatprep.subr.bf16.mxu0 0
    %180 = vmatpush1.bf16.msra.mxu0 0
    %181 = vmatprep.subr.bf16.mxu0 0
    %182 = vmatpush1.bf16.msra.mxu0 0
    %183 = vmatprep.subr.bf16.mxu0 0
    %184 = vmatpush1.bf16.msra.mxu0 0
    %185 = vmatprep.subr.bf16.mxu0 0
    %186 = vmatpush1.bf16.msra.mxu0 0
    %187 = vmatprep.mubr.bf16.mxu0 0
    %188 = vmatmul.mubr.bf16.gmra.mrb[0].mxu0 %v153
    %v189 = vpop.f32.mrb[0].mxu0
    %v190 = vadd.f32 0.0, %v189
    %v191 = vpop.f32.mrb[0].mxu0
    %v192 = vadd.f32 0.0, %v191
    %v193 = vpop.f32.mrb[0].mxu0
    %v194 = vpop.f32.mrb[0].mxu0
    %195 = vdwg.mxu0
    %196 = vmatprep.subr.bf16.mxu0 %v138
    %197 = vmatpush1.bf16.msra.mxu0 %v137
    %198 = vmatprep.subr.bf16.mxu0 %v142
    %199 = vmatpush1.bf16.msra.mxu0 %v141
    %200 = vmatprep.subr.bf16.mxu0 0
    %201 = vmatpush1.bf16.msra.mxu0 0
    %202 = vmatprep.subr.bf16.mxu0 0
    %203 = vmatpush1.bf16.msra.mxu0 0
    %204 = vmatprep.subr.bf16.mxu0 0
    %205 = vmatpush1.bf16.msra.mxu0 0
    %206 = vmatprep.subr.bf16.mxu0 0
    %207 = vmatpush1.bf16.msra.mxu0 0
    %208 = vmatprep.subr.bf16.mxu0 0
    %209 = vmatpush1.bf16.msra.mxu0 0
    %210 = vmatprep.subr.bf16.mxu0 0
    %211 = vmatpush1.bf16.msra.mxu0 0
    %212 = vmatprep.subr.bf16.mxu0 0
    %213 = vmatpush1.bf16.msra.mxu0 0
    %214 = vmatprep.subr.bf16.mxu0 0
    %215 = vmatpush1.bf16.msra.mxu0 0
    %216 = vmatprep.subr.bf16.mxu0 0
    %217 = vmatpush1.bf16.msra.mxu0 0
    %218 = vmatprep.subr.bf16.mxu0 0
    %219 = vmatpush1.bf16.msra.mxu0 0
    %220 = vmatprep.subr.bf16.mxu0 0
    %221 = vmatpush1.bf16.msra.mxu0 0
    %222 = vmatprep.subr.bf16.mxu0 0
    %223 = vmatpush1.bf16.msra.mxu0 0
    %224 = vmatprep.subr.bf16.mxu0 0
    %225 = vmatpush1.bf16.msra.mxu0 0
    %226 = vmatprep.subr.bf16.mxu0 0
    %227 = vmatpush1.bf16.msra.mxu0 0
    %228 = vmatprep.mubr.bf16.mxu0 0
    %229 = vmatmul.mubr.bf16.gmra.mrb[0].mxu0 %v153
    %v230 = vpop.f32.mrb[0].mxu0
    %v231 = vadd.f32 0.0, %v230
    %v232 = vpop.f32.mrb[0].mxu0
    %v233 = vadd.f32 0.0, %v232
    %v234 = vpop.f32.mrb[0].mxu0
    %v235 = vpop.f32.mrb[0].mxu0
    %236 = vdwg.mxu0
    %v237 = vpack.c.bf16 %v190, %v190
    %v238 = vpack.c.bf16 %v192, %v192
    %v239 = vpack.c.bf16 %v231, %v231
    %v240 = vpack.c.bf16 %v233, %v233
    %v241 = vld [vmem:[%s2] sm:$0xf]
    %v244 = vunpack.c.l.s4 1966171168
    %v245 = vunpack.c.0.s8 %v244
    %v246 = vlaneseq
    %v247 = vshrl.u32 %v246, 7
    %v248 = vsub.s32 %v245, %v247
    %v249 = vrot.slane %v241, %v248
    %v250 = vcombine.high %v249, %v249
    %v252 = vunpack.c.l.s4 1966171168
    %v253 = vunpack.c.0.s8 %v252
    %v254 = vlaneseq
    %v255 = vshrl.u32 %v254, 7
    %v256 = vsub.s32 %v253, %v255
    %v257 = vrot.slane %v249, %v256
    %v259 = vunpack.c.l.s4 1966171168
    %v260 = vunpack.c.0.s8 %v259
    %v261 = vlaneseq
    %v262 = vshrl.u32 %v261, 7
    %v263 = vsub.s32 %v260, %v262
    %v264 = vrot.slane %v250, %v263
    %v265 = vcombine.high %v257, %v257
    %v266 = vcombine.high %v264, %v264
    %v268 = vpack.i.b16 %v257, %v257
    %v270 = vlaneseq
    %v271 = vshrl.u32 %v270, 7
    %v272 = vsub.s32 0, %v271
    %v273 = vrot.slane %v268, %v272
    %v275 = vpack.i.b16 %v264, %v264
    %v277 = vlaneseq
    %v278 = vshrl.u32 %v277, 7
    %v279 = vsub.s32 0, %v278
    %v280 = vrot.slane %v275, %v279
    %v282 = vpack.i.b16 %v265, %v265
    %v284 = vlaneseq
    %v285 = vshrl.u32 %v284, 7
    %v286 = vsub.s32 0, %v285
    %v287 = vrot.slane %v282, %v286
    %v289 = vpack.i.b16 %v266, %v266
    %v291 = vlaneseq
    %v292 = vshrl.u32 %v291, 7
    %v293 = vsub.s32 0, %v292
    %v294 = vrot.slane %v289, %v293
    %v295 = vadd.bf16 %v237, %v273
    %v296 = vadd.bf16 %v238, %v280
    %v297 = vadd.bf16 %v239, %v287
    %v298 = vadd.bf16 %v240, %v294
    %v299 = vmax.bf16 %v295, 0
    %v300 = vmax.bf16 %v296, 0
    %v301 = vmax.bf16 %v297, 0
    %v302 = vmax.bf16 %v298, 0
    %v303 = vld [vmem:[#allocation6] sm:$0xff]
    %v304 = vld [vmem:[#allocation6 + $0x8] sm:$0xff]
    %v305 = vld [vmem:[#allocation6 + $0x10] sm:$0xff]
    %v306 = vld [vmem:[#allocation6 + $0x18] sm:$0xff]
    %v307 = vld [vmem:[#allocation6 + $0x20] sm:$0xff]
    %v308 = vld [vmem:[#allocation6 + $0x28] sm:$0xff]
    %v309 = vld [vmem:[#allocation6 + $0x30] sm:$0xff]
    %v310 = vld [vmem:[#allocation6 + $0x38] sm:$0xff]
    %v311 = vld [vmem:[#allocation6 + $0x40] sm:$0xff]
    %v312 = vld [vmem:[#allocation6 + $0x48] sm:$0xff]
    %v313 = vld [vmem:[#allocation6 + $0x50] sm:$0xff]
    %v314 = vld [vmem:[#allocation6 + $0x58] sm:$0xff]
    %v315 = vld [vmem:[#allocation6 + $0x60] sm:$0xff]
    %v316 = vld [vmem:[#allocation6 + $0x68] sm:$0xff]
    %v317 = vld [vmem:[#allocation6 + $0x70] sm:$0xff]
    %v318 = vld [vmem:[#allocation6 + $0x78] sm:$0xff]
    %v319 = vld [vmem:[#allocation6 + $0x80] sm:$0xff]
    %v320 = vld [vmem:[#allocation6 + $0x88] sm:$0xff]
    %v321 = vld [vmem:[#allocation6 + $0x90] sm:$0xff]
    %v322 = vld [vmem:[#allocation6 + $0x98] sm:$0xff]
    %v323 = vld [vmem:[#allocation6 + $0xa0] sm:$0xff]
    %v324 = vld [vmem:[#allocation6 + $0xa8] sm:$0xff]
    %v325 = vld [vmem:[#allocation6 + $0xb0] sm:$0xff]
    %v326 = vld [vmem:[#allocation6 + $0xb8] sm:$0xff]
    %v327 = vld [vmem:[#allocation6 + $0xc0] sm:$0xff]
    %v328 = vld [vmem:[#allocation6 + $0xc8] sm:$0xff]
    %v329 = vld [vmem:[#allocation6 + $0xd0] sm:$0xff]
    %v330 = vld [vmem:[#allocation6 + $0xd8] sm:$0xff]
    %v331 = vld [vmem:[#allocation6 + $0xe0] sm:$0xff]
    %v332 = vld [vmem:[#allocation6 + $0xe8] sm:$0xff]
    %v333 = vld [vmem:[#allocation6 + $0xf0] sm:$0xff]
    %v334 = vld [vmem:[#allocation6 + $0xf8] sm:$0xff]
    %v335 = vld [vmem:[#allocation6 + $0x100] sm:$0xff]
    %v336 = vld [vmem:[#allocation6 + $0x108] sm:$0xff]
    %v337 = vld [vmem:[#allocation6 + $0x110] sm:$0xff]
    %v338 = vld [vmem:[#allocation6 + $0x118] sm:$0xff]
    %v339 = vld [vmem:[#allocation6 + $0x120] sm:$0xff]
    %v340 = vld [vmem:[#allocation6 + $0x128] sm:$0xff]
    %v341 = vld [vmem:[#allocation6 + $0x130] sm:$0xff]
    %v342 = vld [vmem:[#allocation6 + $0x138] sm:$0xff]
    %v343 = vld [vmem:[#allocation6 + $0x140] sm:$0xff]
    %v344 = vld [vmem:[#allocation6 + $0x148] sm:$0xff]
    %v345 = vld [vmem:[#allocation6 + $0x150] sm:$0xff]
    %v346 = vld [vmem:[#allocation6 + $0x158] sm:$0xff]
    %v347 = vld [vmem:[#allocation6 + $0x160] sm:$0xff]
    %v348 = vld [vmem:[#allocation6 + $0x168] sm:$0xff]
    %v349 = vld [vmem:[#allocation6 + $0x170] sm:$0xff]
    %v350 = vld [vmem:[#allocation6 + $0x178] sm:$0xff]
    %v351 = vld [vmem:[#allocation6 + $0x180] sm:$0xff]
    %v352 = vld [vmem:[#allocation6 + $0x188] sm:$0xff]
    %v353 = vld [vmem:[#allocation6 + $0x190] sm:$0xff]
    %v354 = vld [vmem:[#allocation6 + $0x198] sm:$0xff]
    %v355 = vld [vmem:[#allocation6 + $0x1a0] sm:$0xff]
    %v356 = vld [vmem:[#allocation6 + $0x1a8] sm:$0xff]
    %v357 = vld [vmem:[#allocation6 + $0x1b0] sm:$0xff]
    %v358 = vld [vmem:[#allocation6 + $0x1b8] sm:$0xff]
    %v359 = vld [vmem:[#allocation6 + $0x1c0] sm:$0xff]
    %v360 = vld [vmem:[#allocation6 + $0x1c8] sm:$0xff]
    %v361 = vld [vmem:[#allocation6 + $0x1d0] sm:$0xff]
    %v362 = vld [vmem:[#allocation6 + $0x1d8] sm:$0xff]
    %v363 = vld [vmem:[#allocation6 + $0x1e0] sm:$0xff]
    %v364 = vld [vmem:[#allocation6 + $0x1e8] sm:$0xff]
    %v365 = vld [vmem:[#allocation6 + $0x1f0] sm:$0xff]
    %v366 = vld [vmem:[#allocation6 + $0x1f8] sm:$0xff]
    %v431 = vunpack.c.l.b16 %v303
    %v432 = vunpack.c.h.b16 %v303
    %v433 = vunpack.c.l.b16 %v304
    %v434 = vunpack.c.h.b16 %v304
    %v435 = vunpack.c.l.b16 %v305
    %v436 = vunpack.c.h.b16 %v305
    %v437 = vunpack.c.l.b16 %v306
    %v438 = vunpack.c.h.b16 %v306
    %v439 = vunpack.c.l.b16 %v307
    %v440 = vunpack.c.h.b16 %v307
    %v441 = vunpack.c.l.b16 %v308
    %v442 = vunpack.c.h.b16 %v308
    %v443 = vunpack.c.l.b16 %v309
    %v444 = vunpack.c.h.b16 %v309
    %v445 = vunpack.c.l.b16 %v310
    %v446 = vunpack.c.h.b16 %v310
    %v447 = vunpack.c.l.b16 %v311
    %v448 = vunpack.c.h.b16 %v311
    %v449 = vunpack.c.l.b16 %v312
    %v450 = vunpack.c.h.b16 %v312
    %v451 = vunpack.c.l.b16 %v313
    %v452 = vunpack.c.h.b16 %v313
    %v453 = vunpack.c.l.b16 %v314
    %v454 = vunpack.c.h.b16 %v314
    %v455 = vunpack.c.l.b16 %v315
    %v456 = vunpack.c.h.b16 %v315
    %v457 = vunpack.c.l.b16 %v316
    %v458 = vunpack.c.h.b16 %v316
    %v459 = vunpack.c.l.b16 %v317
    %v460 = vunpack.c.h.b16 %v317
    %v461 = vunpack.c.l.b16 %v318
    %v462 = vunpack.c.h.b16 %v318
    %v463 = vunpack.c.l.b16 %v319
    %v464 = vunpack.c.h.b16 %v319
    %v465 = vunpack.c.l.b16 %v320
    %v466 = vunpack.c.h.b16 %v320
    %v467 = vunpack.c.l.b16 %v321
    %v468 = vunpack.c.h.b16 %v321
    %v469 = vunpack.c.l.b16 %v322
    %v470 = vunpack.c.h.b16 %v322
    %v471 = vunpack.c.l.b16 %v323
    %v472 = vunpack.c.h.b16 %v323
    %v473 = vunpack.c.l.b16 %v324
    %v474 = vunpack.c.h.b16 %v324
    %v475 = vunpack.c.l.b16 %v325
    %v476 = vunpack.c.h.b16 %v325
    %v477 = vunpack.c.l.b16 %v326
    %v478 = vunpack.c.h.b16 %v326
    %v479 = vunpack.c.l.b16 %v327
    %v480 = vunpack.c.h.b16 %v327
    %v481 = vunpack.c.l.b16 %v328
    %v482 = vunpack.c.h.b16 %v328
    %v483 = vunpack.c.l.b16 %v329
    %v484 = vunpack.c.h.b16 %v329
    %v485 = vunpack.c.l.b16 %v330
    %v486 = vunpack.c.h.b16 %v330
    %v487 = vunpack.c.l.b16 %v331
    %v488 = vunpack.c.h.b16 %v331
    %v489 = vunpack.c.l.b16 %v332
    %v490 = vunpack.c.h.b16 %v332
    %v491 = vunpack.c.l.b16 %v333
    %v492 = vunpack.c.h.b16 %v333
    %v493 = vunpack.c.l.b16 %v334
    %v494 = vunpack.c.h.b16 %v334
    %v495 = vunpack.c.l.b16 %v335
    %v496 = vunpack.c.h.b16 %v335
    %v497 = vunpack.c.l.b16 %v336
    %v498 = vunpack.c.h.b16 %v336
    %v499 = vunpack.c.l.b16 %v337
    %v500 = vunpack.c.h.b16 %v337
    %v501 = vunpack.c.l.b16 %v338
    %v502 = vunpack.c.h.b16 %v338
    %v503 = vunpack.c.l.b16 %v339
    %v504 = vunpack.c.h.b16 %v339
    %v505 = vunpack.c.l.b16 %v340
    %v506 = vunpack.c.h.b16 %v340
    %v507 = vunpack.c.l.b16 %v341
    %v508 = vunpack.c.h.b16 %v341
    %v509 = vunpack.c.l.b16 %v342
    %v510 = vunpack.c.h.b16 %v342
    %v511 = vunpack.c.l.b16 %v343
    %v512 = vunpack.c.h.b16 %v343
    %v513 = vunpack.c.l.b16 %v344
    %v514 = vunpack.c.h.b16 %v344
    %v515 = vunpack.c.l.b16 %v345
    %v516 = vunpack.c.h.b16 %v345
    %v517 = vunpack.c.l.b16 %v346
    %v518 = vunpack.c.h.b16 %v346
    %v519 = vunpack.c.l.b16 %v347
    %v520 = vunpack.c.h.b16 %v347
    %v521 = vunpack.c.l.b16 %v348
    %v522 = vunpack.c.h.b16 %v348
    %v523 = vunpack.c.l.b16 %v349
    %v524 = vunpack.c.h.b16 %v349
    %v525 = vunpack.c.l.b16 %v350
    %v526 = vunpack.c.h.b16 %v350
    %v527 = vunpack.c.l.b16 %v351
    %v528 = vunpack.c.h.b16 %v351
    %v529 = vunpack.c.l.b16 %v352
    %v530 = vunpack.c.h.b16 %v352
    %v531 = vunpack.c.l.b16 %v353
    %v532 = vunpack.c.h.b16 %v353
    %v533 = vunpack.c.l.b16 %v354
    %v534 = vunpack.c.h.b16 %v354
    %v535 = vunpack.c.l.b16 %v355
    %v536 = vunpack.c.h.b16 %v355
    %v537 = vunpack.c.l.b16 %v356
    %v538 = vunpack.c.h.b16 %v356
    %v539 = vunpack.c.l.b16 %v357
    %v540 = vunpack.c.h.b16 %v357
    %v541 = vunpack.c.l.b16 %v358
    %v542 = vunpack.c.h.b16 %v358
    %v543 = vunpack.c.l.b16 %v359
    %v544 = vunpack.c.h.b16 %v359
    %v545 = vunpack.c.l.b16 %v360
    %v546 = vunpack.c.h.b16 %v360
    %v547 = vunpack.c.l.b16 %v361
    %v548 = vunpack.c.h.b16 %v361
    %v549 = vunpack.c.l.b16 %v362
    %v550 = vunpack.c.h.b16 %v362
    %v551 = vunpack.c.l.b16 %v363
    %v552 = vunpack.c.h.b16 %v363
    %v553 = vunpack.c.l.b16 %v364
    %v554 = vunpack.c.h.b16 %v364
    %v555 = vunpack.c.l.b16 %v365
    %v556 = vunpack.c.h.b16 %v365
    %v557 = vunpack.c.l.b16 %v366
    %v558 = vunpack.c.h.b16 %v366
    %v559 = vpack.c.b16 %v433, %v431
    %v560 = vpack.c.b16 %v434, %v432
    %v561 = vpack.c.b16 %v437, %v435
    %v562 = vpack.c.b16 %v438, %v436
    %v563 = vpack.c.b16 %v441, %v439
    %v564 = vpack.c.b16 %v442, %v440
    %v565 = vpack.c.b16 %v445, %v443
    %v566 = vpack.c.b16 %v446, %v444
    %v567 = vpack.c.b16 %v449, %v447
    %v568 = vpack.c.b16 %v450, %v448
    %v569 = vpack.c.b16 %v453, %v451
    %v570 = vpack.c.b16 %v454, %v452
    %v571 = vpack.c.b16 %v457, %v455
    %v572 = vpack.c.b16 %v458, %v456
    %v573 = vpack.c.b16 %v461, %v459
    %v574 = vpack.c.b16 %v462, %v460
    %v575 = vpack.c.b16 %v465, %v463
    %v576 = vpack.c.b16 %v466, %v464
    %v577 = vpack.c.b16 %v469, %v467
    %v578 = vpack.c.b16 %v470, %v468
    %v579 = vpack.c.b16 %v473, %v471
    %v580 = vpack.c.b16 %v474, %v472
    %v581 = vpack.c.b16 %v477, %v475
    %v582 = vpack.c.b16 %v478, %v476
    %v583 = vpack.c.b16 %v481, %v479
    %v584 = vpack.c.b16 %v482, %v480
    %v585 = vpack.c.b16 %v485, %v483
    %v586 = vpack.c.b16 %v486, %v484
    %v587 = vpack.c.b16 %v489, %v487
    %v588 = vpack.c.b16 %v490, %v488
    %v589 = vpack.c.b16 %v493, %v491
    %v590 = vpack.c.b16 %v494, %v492
    %v591 = vpack.c.b16 %v497, %v495
    %v592 = vpack.c.b16 %v498, %v496
    %v593 = vpack.c.b16 %v501, %v499
    %v594 = vpack.c.b16 %v502, %v500
    %v595 = vpack.c.b16 %v505, %v503
    %v596 = vpack.c.b16 %v506, %v504
    %v597 = vpack.c.b16 %v509, %v507
    %v598 = vpack.c.b16 %v510, %v508
    %v599 = vpack.c.b16 %v513, %v511
    %v600 = vpack.c.b16 %v514, %v512
    %v601 = vpack.c.b16 %v517, %v515
    %v602 = vpack.c.b16 %v518, %v516
    %v603 = vpack.c.b16 %v521, %v519
    %v604 = vpack.c.b16 %v522, %v520
    %v605 = vpack.c.b16 %v525, %v523
    %v606 = vpack.c.b16 %v526, %v524
    %v607 = vpack.c.b16 %v529, %v527
    %v608 = vpack.c.b16 %v530, %v528
    %v609 = vpack.c.b16 %v533, %v531
    %v610 = vpack.c.b16 %v534, %v532
    %v611 = vpack.c.b16 %v537, %v535
    %v612 = vpack.c.b16 %v538, %v536
    %v613 = vpack.c.b16 %v541, %v539
    %v614 = vpack.c.b16 %v542, %v540
    %v615 = vpack.c.b16 %v545, %v543
    %v616 = vpack.c.b16 %v546, %v544
    %v617 = vpack.c.b16 %v549, %v547
    %v618 = vpack.c.b16 %v550, %v548
    %v619 = vpack.c.b16 %v553, %v551
    %v620 = vpack.c.b16 %v554, %v552
    %v621 = vpack.c.b16 %v557, %v555
    %v622 = vpack.c.b16 %v558, %v556
    %687 = vmatprep.subr.bf16.mxu0 %v560
    %688 = vmatpush1.bf16.msra.mxu0 %v559
    %689 = vmatprep.subr.bf16.mxu0 %v562
    %690 = vmatpush1.bf16.msra.mxu0 %v561
    %691 = vmatprep.subr.bf16.mxu0 %v564
    %692 = vmatpush1.bf16.msra.mxu0 %v563
    %693 = vmatprep.subr.bf16.mxu0 %v566
    %694 = vmatpush1.bf16.msra.mxu0 %v565
    %695 = vmatprep.subr.bf16.mxu0 %v568
    %696 = vmatpush1.bf16.msra.mxu0 %v567
    %697 = vmatprep.subr.bf16.mxu0 %v570
    %698 = vmatpush1.bf16.msra.mxu0 %v569
    %699 = vmatprep.subr.bf16.mxu0 %v572
    %700 = vmatpush1.bf16.msra.mxu0 %v571
    %701 = vmatprep.subr.bf16.mxu0 %v574
    %702 = vmatpush1.bf16.msra.mxu0 %v573
    %703 = vmatprep.subr.bf16.mxu0 %v576
    %704 = vmatpush1.bf16.msra.mxu0 %v575
    %705 = vmatprep.subr.bf16.mxu0 %v578
    %706 = vmatpush1.bf16.msra.mxu0 %v577
    %707 = vmatprep.subr.bf16.mxu0 %v580
    %708 = vmatpush1.bf16.msra.mxu0 %v579
    %709 = vmatprep.subr.bf16.mxu0 %v582
    %710 = vmatpush1.bf16.msra.mxu0 %v581
    %711 = vmatprep.subr.bf16.mxu0 %v584
    %712 = vmatpush1.bf16.msra.mxu0 %v583
    %713 = vmatprep.subr.bf16.mxu0 %v586
    %714 = vmatpush1.bf16.msra.mxu0 %v585
    %715 = vmatprep.subr.bf16.mxu0 %v588
    %716 = vmatpush1.bf16.msra.mxu0 %v587
    %717 = vmatprep.subr.bf16.mxu0 %v590
    %718 = vmatpush1.bf16.msra.mxu0 %v589
    %719 = vmatprep.mubr.bf16.mxu0 %v300
    %720 = vmatmul.mubr.bf16.gmra.mrb[0].mxu0 %v299
    %v721 = vpop.f32.mrb[0].mxu0
    %v722 = vadd.f32 0.0, %v721
    %v723 = vpop.f32.mrb[0].mxu0
    %v724 = vadd.f32 0.0, %v723
    %v725 = vpop.f32.mrb[0].mxu0
    %v726 = vpop.f32.mrb[0].mxu0
    %727 = vdwg.mxu0
    %728 = vmatprep.subr.bf16.mxu0 %v592
    %729 = vmatpush1.bf16.msra.mxu0 %v591
    %730 = vmatprep.subr.bf16.mxu0 %v594
    %731 = vmatpush1.bf16.msra.mxu0 %v593
    %732 = vmatprep.subr.bf16.mxu0 %v596
    %733 = vmatpush1.bf16.msra.mxu0 %v595
    %734 = vmatprep.subr.bf16.mxu0 %v598
    %735 = vmatpush1.bf16.msra.mxu0 %v597
    %736 = vmatprep.subr.bf16.mxu0 %v600
    %737 = vmatpush1.bf16.msra.mxu0 %v599
    %738 = vmatprep.subr.bf16.mxu0 %v602
    %739 = vmatpush1.bf16.msra.mxu0 %v601
    %740 = vmatprep.subr.bf16.mxu0 %v604
    %741 = vmatpush1.bf16.msra.mxu0 %v603
    %742 = vmatprep.subr.bf16.mxu0 %v606
    %743 = vmatpush1.bf16.msra.mxu0 %v605
    %744 = vmatprep.subr.bf16.mxu0 %v608
    %745 = vmatpush1.bf16.msra.mxu0 %v607
    %746 = vmatprep.subr.bf16.mxu0 %v610
    %747 = vmatpush1.bf16.msra.mxu0 %v609
    %748 = vmatprep.subr.bf16.mxu0 %v612
    %749 = vmatpush1.bf16.msra.mxu0 %v611
    %750 = vmatprep.subr.bf16.mxu0 %v614
    %751 = vmatpush1.bf16.msra.mxu0 %v613
    %752 = vmatprep.subr.bf16.mxu0 %v616
    %753 = vmatpush1.bf16.msra.mxu0 %v615
    %754 = vmatprep.subr.bf16.mxu0 %v618
    %755 = vmatpush1.bf16.msra.mxu0 %v617
    %756 = vmatprep.subr.bf16.mxu0 %v620
    %757 = vmatpush1.bf16.msra.mxu0 %v619
    %758 = vmatprep.subr.bf16.mxu0 %v622
    %759 = vmatpush1.bf16.msra.mxu0 %v621
    %760 = vmatprep.mubr.bf16.mxu0 %v302
    %761 = vmatmul.mubr.bf16.gmra.mrb[0].mxu0 %v301
    %v762 = vpop.f32.mrb[0].mxu0
    %v763 = vadd.f32 %v722, %v762
    %v764 = vpop.f32.mrb[0].mxu0
    %v765 = vadd.f32 %v724, %v764
    %v766 = vpop.f32.mrb[0].mxu0
    %v767 = vpop.f32.mrb[0].mxu0
    %768 = vdwg.mxu0
    %v769 = vpack.c.bf16 %v763, %v763
    %v770 = vpack.c.bf16 %v765, %v765
    %v771 = vld [vmem:[%s4] sm:$0x3]
    %v774 = vunpack.c.l.s4 1966171168
    %v775 = vunpack.c.0.s8 %v774
    %v776 = vlaneseq
    %v777 = vshrl.u32 %v776, 7
    %v778 = vsub.s32 %v775, %v777
    %v779 = vrot.slane %v771, %v778
    %v780 = vcombine.high %v779, %v779
    %v782 = vunpack.c.l.s4 1966171168
    %v783 = vunpack.c.0.s8 %v782
    %v784 = vlaneseq
    %v785 = vshrl.u32 %v784, 7
    %v786 = vsub.s32 %v783, %v785
    %v787 = vrot.slane %v779, %v786
    %v789 = vunpack.c.l.s4 1966171168
    %v790 = vunpack.c.0.s8 %v789
    %v791 = vlaneseq
    %v792 = vshrl.u32 %v791, 7
    %v793 = vsub.s32 %v790, %v792
    %v794 = vrot.slane %v780, %v793
    %v796 = vpack.i.b16 %v787, %v787
    %v798 = vlaneseq
    %v799 = vshrl.u32 %v798, 7
    %v800 = vsub.s32 0, %v799
    %v801 = vrot.slane %v796, %v800
    %v803 = vpack.i.b16 %v794, %v794
    %v805 = vlaneseq
    %v806 = vshrl.u32 %v805, 7
    %v807 = vsub.s32 0, %v806
    %v808 = vrot.slane %v803, %v807
    %v809 = vadd.bf16 %v769, %v801
    %v810 = vadd.bf16 %v770, %v808
    %v811 = vmax.bf16 %v809, 0
    %v812 = vmax.bf16 %v810, 0
    %v813 = vld [vmem:[#allocation7] sm:$0xf]
    %v814 = vld [vmem:[#allocation7 + $0x4] sm:$0xf]
    %v815 = vld [vmem:[#allocation7 + $0x8] sm:$0xf]
    %v816 = vld [vmem:[#allocation7 + $0xc] sm:$0xf]
    %v817 = vld [vmem:[#allocation7 + $0x10] sm:$0xf]
    %v818 = vld [vmem:[#allocation7 + $0x14] sm:$0xf]
    %v819 = vld [vmem:[#allocation7 + $0x18] sm:$0xf]
    %v820 = vld [vmem:[#allocation7 + $0x1c] sm:$0xf]
    %v821 = vld [vmem:[#allocation7 + $0x20] sm:$0xf]
    %v822 = vld [vmem:[#allocation7 + $0x24] sm:$0xf]
    %v823 = vld [vmem:[#allocation7 + $0x28] sm:$0xf]
    %v824 = vld [vmem:[#allocation7 + $0x2c] sm:$0xf]
    %v825 = vld [vmem:[#allocation7 + $0x30] sm:$0xf]
    %v826 = vld [vmem:[#allocation7 + $0x34] sm:$0xf]
    %v827 = vld [vmem:[#allocation7 + $0x38] sm:$0xf]
    %v828 = vld [vmem:[#allocation7 + $0x3c] sm:$0xf]
    %v829 = vld [vmem:[#allocation7 + $0x40] sm:$0xf]
    %v830 = vld [vmem:[#allocation7 + $0x44] sm:$0xf]
    %v831 = vld [vmem:[#allocation7 + $0x48] sm:$0xf]
    %v832 = vld [vmem:[#allocation7 + $0x4c] sm:$0xf]
    %v833 = vld [vmem:[#allocation7 + $0x50] sm:$0xf]
    %v834 = vld [vmem:[#allocation7 + $0x54] sm:$0xf]
    %v835 = vld [vmem:[#allocation7 + $0x58] sm:$0xf]
    %v836 = vld [vmem:[#allocation7 + $0x5c] sm:$0xf]
    %v837 = vld [vmem:[#allocation7 + $0x60] sm:$0xf]
    %v838 = vld [vmem:[#allocation7 + $0x64] sm:$0xf]
    %v839 = vld [vmem:[#allocation7 + $0x68] sm:$0xf]
    %v840 = vld [vmem:[#allocation7 + $0x6c] sm:$0xf]
    %v841 = vld [vmem:[#allocation7 + $0x70] sm:$0xf]
    %v842 = vld [vmem:[#allocation7 + $0x74] sm:$0xf]
    %v843 = vld [vmem:[#allocation7 + $0x78] sm:$0xf]
    %v844 = vld [vmem:[#allocation7 + $0x7c] sm:$0xf]
    %v877 = vunpack.c.l.b16 %v813
    %v878 = vunpack.c.l.b16 %v814
    %v879 = vunpack.c.l.b16 %v815
    %v880 = vunpack.c.l.b16 %v816
    %v881 = vunpack.c.l.b16 %v817
    %v882 = vunpack.c.l.b16 %v818
    %v883 = vunpack.c.l.b16 %v819
    %v884 = vunpack.c.l.b16 %v820
    %v885 = vunpack.c.l.b16 %v821
    %v886 = vunpack.c.l.b16 %v822
    %v887 = vunpack.c.l.b16 %v823
    %v888 = vunpack.c.l.b16 %v824
    %v889 = vunpack.c.l.b16 %v825
    %v890 = vunpack.c.l.b16 %v826
    %v891 = vunpack.c.l.b16 %v827
    %v892 = vunpack.c.l.b16 %v828
    %v893 = vunpack.c.l.b16 %v829
    %v894 = vunpack.c.l.b16 %v830
    %v895 = vunpack.c.l.b16 %v831
    %v896 = vunpack.c.l.b16 %v832
    %v897 = vunpack.c.l.b16 %v833
    %v898 = vunpack.c.l.b16 %v834
    %v899 = vunpack.c.l.b16 %v835
    %v900 = vunpack.c.l.b16 %v836
    %v901 = vunpack.c.l.b16 %v837
    %v902 = vunpack.c.l.b16 %v838
    %v903 = vunpack.c.l.b16 %v839
    %v904 = vunpack.c.l.b16 %v840
    %v905 = vunpack.c.l.b16 %v841
    %v906 = vunpack.c.l.b16 %v842
    %v907 = vunpack.c.l.b16 %v843
    %v908 = vunpack.c.l.b16 %v844
    %v909 = vpack.c.b16 %v878, %v877
    %v910 = vpack.c.b16 %v880, %v879
    %v911 = vpack.c.b16 %v882, %v881
    %v912 = vpack.c.b16 %v884, %v883
    %v913 = vpack.c.b16 %v886, %v885
    %v914 = vpack.c.b16 %v888, %v887
    %v915 = vpack.c.b16 %v890, %v889
    %v916 = vpack.c.b16 %v892, %v891
    %v917 = vpack.c.b16 %v894, %v893
    %v918 = vpack.c.b16 %v896, %v895
    %v919 = vpack.c.b16 %v898, %v897
    %v920 = vpack.c.b16 %v900, %v899
    %v921 = vpack.c.b16 %v902, %v901
    %v922 = vpack.c.b16 %v904, %v903
    %v923 = vpack.c.b16 %v906, %v905
    %v924 = vpack.c.b16 %v908, %v907
    %941 = vmatprep.subr.bf16.mxu0 0
    %942 = vmatpush1.bf16.msra.mxu0 %v909
    %943 = vmatprep.subr.bf16.mxu0 0
    %944 = vmatpush1.bf16.msra.mxu0 %v910
    %945 = vmatprep.subr.bf16.mxu0 0
    %946 = vmatpush1.bf16.msra.mxu0 %v911
    %947 = vmatprep.subr.bf16.mxu0 0
    %948 = vmatpush1.bf16.msra.mxu0 %v912
    %949 = vmatprep.subr.bf16.mxu0 0
    %950 = vmatpush1.bf16.msra.mxu0 %v913
    %951 = vmatprep.subr.bf16.mxu0 0
    %952 = vmatpush1.bf16.msra.mxu0 %v914
    %953 = vmatprep.subr.bf16.mxu0 0
    %954 = vmatpush1.bf16.msra.mxu0 %v915
    %955 = vmatprep.subr.bf16.mxu0 0
    %956 = vmatpush1.bf16.msra.mxu0 %v916
    %957 = vmatprep.subr.bf16.mxu0 0
    %958 = vmatpush1.bf16.msra.mxu0 %v917
    %959 = vmatprep.subr.bf16.mxu0 0
    %960 = vmatpush1.bf16.msra.mxu0 %v918
    %961 = vmatprep.subr.bf16.mxu0 0
    %962 = vmatpush1.bf16.msra.mxu0 %v919
    %963 = vmatprep.subr.bf16.mxu0 0
    %964 = vmatpush1.bf16.msra.mxu0 %v920
    %965 = vmatprep.subr.bf16.mxu0 0
    %966 = vmatpush1.bf16.msra.mxu0 %v921
    %967 = vmatprep.subr.bf16.mxu0 0
    %968 = vmatpush1.bf16.msra.mxu0 %v922
    %969 = vmatprep.subr.bf16.mxu0 0
    %970 = vmatpush1.bf16.msra.mxu0 %v923
    %971 = vmatprep.subr.bf16.mxu0 0
    %972 = vmatpush1.bf16.msra.mxu0 %v924
    %973 = vmatprep.mubr.bf16.mxu0 %v812
    %974 = vmatmul.mubr.bf16.gmra.mrb[0].mxu0 %v811
    %v975 = vpop.f32.mrb[0].mxu0
    %v976 = vadd.f32 0.0, %v975
    %v977 = vpop.f32.mrb[0].mxu0
    %v978 = vpop.f32.mrb[0].mxu0
    %v979 = vpop.f32.mrb[0].mxu0
    %980 = vdwg.mxu0
    %v981 = vpack.c.bf16 %v976, %v976
    %v982 = vld [vmem:[%s6] sm:$0x1]
    %v984 = vpack.i.b16 %v982, %v982
    %v986 = vlaneseq
    %v987 = vshrl.u32 %v986, 7
    %v988 = vsub.s32 0, %v987
    %v989 = vrot.slane %v984, %v988
    %v990 = vadd.bf16 %v981, %v989
    %v991 = vmax.bf16 %v990, 0
    %v992 = vld [vmem:[#allocation9] sm:$0xf]
    %v993 = vld [vmem:[#allocation9 + $0x4] sm:$0xf]
    %v994 = vld [vmem:[#allocation9 + $0x8] sm:$0xf]
    %v995 = vld [vmem:[#allocation9 + $0xc] sm:$0xf]
    %v996 = vld [vmem:[#allocation9 + $0x10] sm:$0xf]
    %v997 = vld [vmem:[#allocation9 + $0x14] sm:$0xf]
    %v998 = vld [vmem:[#allocation9 + $0x18] sm:$0xf]
    %v999 = vld [vmem:[#allocation9 + $0x1c] sm:$0xf]
    %v1000 = vld [vmem:[#allocation9 + $0x20] sm:$0xf]
    %v1001 = vld [vmem:[#allocation9 + $0x24] sm:$0xf]
    %v1002 = vld [vmem:[#allocation9 + $0x28] sm:$0xf]
    %v1003 = vld [vmem:[#allocation9 + $0x2c] sm:$0xf]
    %v1004 = vld [vmem:[#allocation9 + $0x30] sm:$0xf]
    %v1005 = vld [vmem:[#allocation9 + $0x34] sm:$0xf]
    %v1006 = vld [vmem:[#allocation9 + $0x38] sm:$0xf]
    %v1007 = vld [vmem:[#allocation9 + $0x3c] sm:$0xf]
    %v1024 = vunpack.c.l.b16 %v992
    %v1025 = vunpack.c.l.b16 %v993
    %v1026 = vunpack.c.l.b16 %v994
    %v1027 = vunpack.c.l.b16 %v995
    %v1028 = vunpack.c.l.b16 %v996
    %v1029 = vunpack.c.l.b16 %v997
    %v1030 = vunpack.c.l.b16 %v998
    %v1031 = vunpack.c.l.b16 %v999
    %v1032 = vunpack.c.l.b16 %v1000
    %v1033 = vunpack.c.l.b16 %v1001
    %v1034 = vunpack.c.l.b16 %v1002
    %v1035 = vunpack.c.l.b16 %v1003
    %v1036 = vunpack.c.l.b16 %v1004
    %v1037 = vunpack.c.l.b16 %v1005
    %v1038 = vunpack.c.l.b16 %v1006
    %v1039 = vunpack.c.l.b16 %v1007
    %v1040 = vpack.c.b16 %v1025, %v1024
    %v1041 = vpack.c.b16 %v1027, %v1026
    %v1042 = vpack.c.b16 %v1029, %v1028
    %v1043 = vpack.c.b16 %v1031, %v1030
    %v1044 = vpack.c.b16 %v1033, %v1032
    %v1045 = vpack.c.b16 %v1035, %v1034
    %v1046 = vpack.c.b16 %v1037, %v1036
    %v1047 = vpack.c.b16 %v1039, %v1038
    %1056 = vmatprep.subr.bf16.mxu0 0
    %1057 = vmatpush1.bf16.msra.mxu0 %v1040
    %1058 = vmatprep.subr.bf16.mxu0 0
    %1059 = vmatpush1.bf16.msra.mxu0 %v1041
    %1060 = vmatprep.subr.bf16.mxu0 0
    %1061 = vmatpush1.bf16.msra.mxu0 %v1042
    %1062 = vmatprep.subr.bf16.mxu0 0
    %1063 = vmatpush1.bf16.msra.mxu0 %v1043
    %1064 = vmatprep.subr.bf16.mxu0 0
    %1065 = vmatpush1.bf16.msra.mxu0 %v1044
    %1066 = vmatprep.subr.bf16.mxu0 0
    %1067 = vmatpush1.bf16.msra.mxu0 %v1045
    %1068 = vmatprep.subr.bf16.mxu0 0
    %1069 = vmatpush1.bf16.msra.mxu0 %v1046
    %1070 = vmatprep.subr.bf16.mxu0 0
    %1071 = vmatpush1.bf16.msra.mxu0 %v1047
    %1072 = vmatprep.subr.bf16.mxu0 0
    %1073 = vmatpush1.bf16.msra.mxu0 0
    %1074 = vmatprep.subr.bf16.mxu0 0
    %1075 = vmatpush1.bf16.msra.mxu0 0
    %1076 = vmatprep.subr.bf16.mxu0 0
    %1077 = vmatpush1.bf16.msra.mxu0 0
    %1078 = vmatprep.subr.bf16.mxu0 0
    %1079 = vmatpush1.bf16.msra.mxu0 0
    %1080 = vmatprep.subr.bf16.mxu0 0
    %1081 = vmatpush1.bf16.msra.mxu0 0
    %1082 = vmatprep.subr.bf16.mxu0 0
    %1083 = vmatpush1.bf16.msra.mxu0 0
    %1084 = vmatprep.subr.bf16.mxu0 0
    %1085 = vmatpush1.bf16.msra.mxu0 0
    %1086 = vmatprep.subr.bf16.mxu0 0
    %1087 = vmatpush1.bf16.msra.mxu0 0
    %1088 = vmatprep.mubr.bf16.mxu0 0
    %1089 = vmatmul.mubr.bf16.gmra.mrb[0].mxu0 %v991
    %v1090 = vpop.f32.mrb[0].mxu0
    %v1091 = vadd.f32 0.0, %v1090
    %v1092 = vpop.f32.mrb[0].mxu0
    %v1093 = vpop.f32.mrb[0].mxu0
    %v1094 = vpop.f32.mrb[0].mxu0
    %1095 = vdwg.mxu0
    %v1096 = vpack.c.bf16 %v1091, %v1091
    %v1097 = vld [vmem:[%s8] sm:$0x1]
    %v1099 = vpack.i.b16 %v1097, %v1097
    %v1101 = vlaneseq
    %v1102 = vshrl.u32 %v1101, 7
    %v1103 = vsub.s32 0, %v1102
    %v1104 = vrot.slane %v1099, %v1103
    %v1105 = vadd.bf16 %v1096, %v1104
    %v1108 = vunpack.c.l.s4 1966171168
    %v1109 = vunpack.c.0.s8 %v1108
    %v1110 = vlaneseq
    %v1111 = vshrl.u32 %v1110, 7
    %v1112 = vsub.s32 %v1109, %v1111
    %v1113 = vrot.slane %v1105, %v1112
    %v1114 = vcombine.high %v1113, %v1113
    %v1116 = vunpack.c.l.s4 1966171168
    %v1117 = vunpack.c.0.s8 %v1116
    %v1118 = vlaneseq
    %v1119 = vshrl.u32 %v1118, 7
    %v1120 = vsub.s32 %v1117, %v1119
    %v1121 = vrot.slane %v1113, %v1120
    %v1123 = vunpack.c.l.s4 1966171168
    %v1124 = vunpack.c.0.s8 %v1123
    %v1125 = vlaneseq
    %v1126 = vshrl.u32 %v1125, 7
    %v1127 = vsub.s32 %v1124, %v1126
    %v1128 = vrot.slane %v1114, %v1127
    %v1129 = vcombine.high %v1121, %v1121
    %v1130 = vcombine.high %v1128, %v1128
    %1135 = vst [vmem:[#allocation10] sm:$0x1] %v1121
    %1136 = vst [vmem:[#allocation10 + $0x1] sm:$0x1] %v1128
    %1137 = vst [vmem:[#allocation10 + $0x2] sm:$0x1] %v1129
    %1138 = vst [vmem:[#allocation10 + $0x3] sm:$0x1] %v1130
    // Predicated region
    $region58: #{advanced_qnet_forward.1} parent=1 // pred_check
      _
    $region59: #{advanced_qnet_forward.1} parent=1 // pred_check_branch
      %1140 = sbr.rel (0) target = $region61
    $region60: #{advanced_qnet_forward.1} parent=1 // pred_region
      // Predicated region
      $region62: #{advanced_qnet_forward.1} parent=60 // pred_check
        _
      $region63: #{advanced_qnet_forward.1} parent=60 // pred_check_branch
        %1142 = sbr.rel (0) target = $region65
      $region64: #{advanced_qnet_forward.1} parent=60 // pred_region
        // Predicated region
        $region66: #{advanced_qnet_forward.1} parent=64 // pred_check
          _
        $region67: #{advanced_qnet_forward.1} parent=64 // pred_check_branch
          %1144 = sbr.rel target = $region69
        $region68: #{advanced_qnet_forward.1} parent=64 // pred_region
          // Predicated region
          $region81: #{advanced_qnet_forward.1} parent=68 // pred_check
            _
          $region82: #{advanced_qnet_forward.1} parent=68 // pred_check_branch
            %1159 = sbr.rel (0) target = $region84
          $region83: #{advanced_qnet_forward.1} parent=68 // pred_region
            loop: start=0, step=1, limit=1
            $region85: #{advanced_qnet_forward.1} parent=83 // loop_pre_header
              _
            $region86: #{advanced_qnet_forward.1} parent=83 // loop_header
              %s1162 = sphi 0, %s1166
              %p1163 = scmp.ge.s32.totalorder %s1162, 1
              %s1167 = sphi [#allocation10], [#allocation10]
              %s1168 = sphi %s9, %s9
            $region87: #{advanced_qnet_forward.1} parent=83 // loop_header_branch
              %1165 = sbr.rel (%p1163) target = $region91
            $region88: #{advanced_qnet_forward.1} parent=83 // loop_body
              %v1169 = vld [vmem:[%s1167] sm:$0x1]
              %1170 = vst [vmem:[%s1168] sm:$0x1] %v1169
            $region89: #{advanced_qnet_forward.1} parent=83 // loop_footer
              %s1166 = sadd.s32 1, %s1162
            $region90: #{advanced_qnet_forward.1} parent=83 // loop_footer_branch
              %1161 = sbr.rel target = $region86
            $region91: #{advanced_qnet_forward.1} parent=83 // loop_exit
              _
          $region84: #{advanced_qnet_forward.1} parent=68 // pred_fallthru
            _
        $region69: #{advanced_qnet_forward.1} parent=64 // pred_fallthru
          _
        // Predicated region
        $region70: #{advanced_qnet_forward.1} parent=64 // pred_check
          _
        $region71: #{advanced_qnet_forward.1} parent=64 // pred_check_branch
          %1146 = sbr.rel (0) target = $region73
        $region72: #{advanced_qnet_forward.1} parent=64 // pred_region
          loop: start=0, step=1, limit=1
          $region74: #{advanced_qnet_forward.1} parent=72 // loop_pre_header
            _
          $region75: #{advanced_qnet_forward.1} parent=72 // loop_header
            %s1149 = sphi 0, %s1153
            %p1150 = scmp.ge.s32.totalorder %s1149, 1
            %s1154 = sphi [#allocation10], [#allocation10]
            %s1155 = sphi %s9, %s9
          $region76: #{advanced_qnet_forward.1} parent=72 // loop_header_branch
            %1152 = sbr.rel (%p1150) target = $region80
          $region77: #{advanced_qnet_forward.1} parent=72 // loop_body
            %v1156 = vld [vmem:[%s1154] sm:$0x1]
            %1157 = vst [vmem:[%s1155] sm:$0x1] %v1156
          $region78: #{advanced_qnet_forward.1} parent=72 // loop_footer
            %s1153 = sadd.s32 1, %s1149
          $region79: #{advanced_qnet_forward.1} parent=72 // loop_footer_branch
            %1148 = sbr.rel target = $region75
          $region80: #{advanced_qnet_forward.1} parent=72 // loop_exit
            _
        $region73: #{advanced_qnet_forward.1} parent=64 // pred_fallthru
          _
      $region65: #{advanced_qnet_forward.1} parent=60 // pred_fallthru
        _
      %1171 = vnop
    $region61: #{advanced_qnet_forward.1} parent=1 // pred_fallthru
      _
    // Predicated region
    $region92: #{advanced_qnet_forward.1} parent=1 // pred_check
      _
    $region93: #{advanced_qnet_forward.1} parent=1 // pred_check_branch
      %1173 = sbr.rel (0) target = $region95
    $region94: #{advanced_qnet_forward.1} parent=1 // pred_region
      _
    $region95: #{advanced_qnet_forward.1} parent=1 // pred_fallthru
      _
    %1174 = vsyncpa [#allocation3], 1
    %1175 = vsyncpa [#allocation5], 1
    %1176 = vsyncpa [#allocation8], 1

</llo_original>
